<compile_context>
chip_gen: v5e
topology: v5e:2x2
jax: 0.10.0
libtpu: 0.0.40
codegen_flags: <defaults>
</compile_context>

<pallas_src>
import math
import numpy as np
import jax
import jax.numpy as jnp
from jax import lax
from jax.experimental import pallas as pl
from jax.experimental.pallas import tpu as pltpu


def _round_up(v, m):
    return ((v + m - 1) // m) * m


def _choose_graphs_per_step(num_graphs, nodes_per_graph, target_rows=256):
    """How many graphs to pack into one block-diagonal grid step.

    * gb * nodes_per_graph must be a multiple of 8 (sublane tiling).
    * capped at (rounded-up) num_graphs -- no point padding past one step.
    * prefers >= 2 grid steps when there are enough graphs (v7x megacore).
    """
    lcm = 8 // math.gcd(nodes_per_graph, 8)            # smallest gb with gb*N % 8 == 0
    gb = (max(1, target_rows // max(nodes_per_graph, 1)) // lcm) * lcm
    gb = max(gb, lcm)
    cap = _round_up(num_graphs, lcm)
    gb = min(gb, cap)
    if gb >= num_graphs and num_graphs > lcm:           # keep the grid >= 2 steps
        gb = max(lcm, _round_up((num_graphs + 1) // 2, lcm))
    return gb


def _stgcnn_kernel(alpha_ref, h_ref, dst_ref, src_ref, b_ref, o_ref):
    # alpha_ref : SMEM (1, 1)        PReLU slope (single shared parameter)
    # h_ref     : VMEM (M, Cout)     X @ W rows for the Gb graphs of this step
    # dst_ref   : VMEM (1, 1, Ep)    int32 edge targets (offset per graph, lane-dense)
    # src_ref   : VMEM (1, Ep, 1)    int32 edge sources (offset per graph, sublane)
    # b_ref     : VMEM (1, Cout)     GCN bias
    # o_ref     : VMEM (M, Cout)     output slab
    m = h_ref.shape[0]
    ep = dst_ref.shape[2]

    dst = dst_ref[0]                                             # (1, Ep)
    src = src_ref[0]                                             # (Ep, 1)

    # One-hot incidence matrices, built directly in matmul orientation (no XLU
    # transpose). 0/1 values are exact in bf16; accumulation is f32 -> exact counts.
    node_per_row = lax.broadcasted_iota(jnp.int32, (m, ep), 0)
    dst_oh = (node_per_row == dst).astype(jnp.bfloat16)          # (M, Ep)
    node_per_col = lax.broadcasted_iota(jnp.int32, (ep, m), 1)
    src_oh_t = (node_per_col == src).astype(jnp.bfloat16)        # (Ep, M)

    # Block-diagonal dense adjacency on the MXU: adj[i, j] = #edges dst==i, src==j.
    adj = jnp.dot(dst_oh, src_oh_t, preferred_element_type=jnp.float32)   # (M, M)

    row = lax.broadcasted_iota(jnp.int32, (m, m), 0)
    col = lax.broadcasted_iota(jnp.int32, (m, m), 1)
    a_hat = jnp.where(row == col, jnp.float32(1.0), adj)         # add_remaining_self_loops

    deg = jnp.sum(a_hat, axis=1, keepdims=True)                  # (M, 1), always >= 1
    dinv = lax.rsqrt(deg)                                        # EUP

    # out = D^-1/2 A_hat D^-1/2 (X W) + b   (X W precomputed in the wrapper)
    h = h_ref[...]                                               # (M, Cout) f32
    agg = jnp.dot(a_hat, h * dinv, preferred_element_type=jnp.float32)
    out = agg * dinv + b_ref[...]

    alpha = alpha_ref[0, 0]
    out = jnp.where(out > 0, out, alpha * out)                   # PReLU
    o_ref[...] = out.astype(o_ref.dtype)


def stgcnn_forward(x, edge_index_list, weight, bias, alpha):
    """Pallas implementation of STGCNN.forward.

    x:               (B, P, N, Fin) node features
    edge_index_list: (B, Pe, E, >=2) integer edge list; Pe == 1 (one shared graph
                     per batch over the P persons, features taken at node index 0)
                     or Pe == P (one graph per person over N nodes)
    weight:          (Fin, Cout) GCNConv linear weight
    bias:            (Cout,)     GCNConv bias
    alpha:           PReLU scalar slope
    Returns (B, P, 1, Cout) if Pe == 1 else (B, P, N, Cout) — matching the torch code.
    """
    B, P, N, Fin = x.shape
    Cout = weight.shape[1]
    single_graph = edge_index_list.shape[1] == 1

    if single_graph:
        g_nodes = x[:, :, 0, :]                                  # (B, P, Fin): P nodes/graph
        g_edges = edge_index_list[:, 0, :, :2]                   # (B, E, 2)
        num_graphs, num_nodes = B, P
        g_nodes = g_nodes.reshape(num_graphs, num_nodes, Fin)
    else:
        g_nodes = x.reshape(B * P, N, Fin)                       # (G, N, Fin)
        g_edges = edge_index_list[..., :2].reshape(B * P, -1, 2)
        num_graphs, num_nodes = B * P, N
    E = g_edges.shape[1]

    gb = _choose_graphs_per_step(num_graphs, num_nodes)          # graphs per grid step
    num_steps = -(-num_graphs // gb)
    g_pad = num_steps * gb
    m = gb * num_nodes                                           # block-diag rows per step
    ep = max(128, _round_up(gb * E, 128))                        # lane-padded edges per step

    # --- hoisted shared linear: H = X @ W over all graphs at once (one XLA matmul) ---
    h = jnp.dot(g_nodes.reshape(num_graphs * num_nodes, Fin).astype(jnp.float32),
                weight.astype(jnp.float32))
    h = jnp.pad(h, ((0, (g_pad - num_graphs) * num_nodes), (0, 0)))   # (num_steps*m, Cout)

    # --- edges: per-graph node-id offsets within a step, OOB -> -1 (dropped), pad lanes ---
    e_raw = jnp.pad(g_edges.astype(jnp.int32),
                    ((0, g_pad - num_graphs), (0, 0), (0, 0)), constant_values=-1)
    offsets = (jnp.arange(g_pad, dtype=jnp.int32) % gb) * num_nodes
    valid = (e_raw >= 0) & (e_raw < num_nodes)
    e_off = jnp.where(valid, e_raw + offsets[:, None, None], -1)      # (G_pad, E, 2)
    e_step = e_off.reshape(num_steps, gb * E, 2)
    e_step = jnp.pad(e_step, ((0, 0), (0, ep - gb * E), (0, 0)), constant_values=-1)
    src_col = e_step[..., 0:1]                                        # (T, Ep, 1)
    dst_row = jnp.swapaxes(e_step[..., 1:2], 1, 2)                    # (T, 1, Ep)

    bias2 = jnp.reshape(bias.astype(jnp.float32), (1, Cout))
    alpha2 = jnp.reshape(jnp.asarray(alpha, jnp.float32), (1, 1))

    out_flat = pl.pallas_call(
        _stgcnn_kernel,
        out_shape=jax.ShapeDtypeStruct((num_steps * m, Cout), jnp.float32),
        grid=(num_steps,),
        in_specs=[
            pl.BlockSpec(memory_space=pltpu.MemorySpace.SMEM),        # alpha (1,1) scalar
            pl.BlockSpec((m, Cout), lambda t: (t, 0)),                # H slab
            pl.BlockSpec((1, 1, ep), lambda t: (t, 0, 0)),            # dst (lane-dense)
            pl.BlockSpec((1, ep, 1), lambda t: (t, 0, 0)),            # src (sublane)
            pl.BlockSpec((1, Cout), lambda t: (0, 0)),                # bias
        ],
        out_specs=pl.BlockSpec((m, Cout), lambda t: (t, 0)),
        compiler_params=pltpu.CompilerParams(
            dimension_semantics=("parallel",)),
    )(alpha2, h, dst_row, src_col, bias2)

    out = out_flat[: num_graphs * num_nodes].reshape(num_graphs, num_nodes, Cout)
    if single_graph:
        return out[:, :, None, :]                                     # (B, P, 1, Cout)
    return out.reshape(B, P, N, Cout)


def stgcnn_reference(x, edge_index_list, weight, bias, alpha):
    """Pure-JAX reference mirroring torch_geometric GCNConv + PReLU."""
    B, P, N, Fin = x.shape
    w = weight.astype(jnp.float32)
    b = bias.astype(jnp.float32)
    hp = jax.lax.Precision.HIGHEST

    def one_graph(node_feat, edges):
        nn_ = node_feat.shape[0]
        src = edges[:, 0]
        dst = edges[:, 1]
        adj = jnp.zeros((nn_, nn_), jnp.float32).at[dst, src].add(1.0)
        eye = jnp.eye(nn_, dtype=bool)
        a_hat = jnp.where(eye, 1.0, adj)                     # self-loops of weight 1
        deg = jnp.sum(a_hat, axis=1)
        dinv = deg ** -0.5
        a_norm = dinv[:, None] * a_hat * dinv[None, :]
        h = jnp.matmul(node_feat.astype(jnp.float32), w, precision=hp)
        out = jnp.matmul(a_norm, h, precision=hp) + b
        return jnp.where(out > 0, out, alpha * out)

    if edge_index_list.shape[1] == 1:
        outs = jax.vmap(one_graph)(x[:, :, 0, :], edge_index_list[:, 0, :, :2])
        return outs[:, :, None, :]
    nodes = x.reshape(B * P, N, Fin)
    edges = edge_index_list[..., :2].reshape(B * P, -1, 2)
    outs = jax.vmap(one_graph)(nodes, edges)
    return outs.reshape(B, P, N, -1)


if __name__ == "__main__":
    B, P, N, Fin, Cout, E = 2, 3, 16, 8, 32, 24

    key = jax.random.PRNGKey(0)
    kx, ke, kw, kb, ke1 = jax.random.split(key, 5)
    x = jax.random.normal(kx, (B, P, N, Fin), jnp.float32)
    edge_index_list = jax.random.randint(ke, (B, P, E, 2), 0, N, dtype=jnp.int32)
    weight = jax.random.normal(kw, (Fin, Cout), jnp.float32) / float(np.sqrt(Fin))
    bias = 0.1 * jax.random.normal(kb, (Cout,), jnp.float32)
    alpha = jnp.float32(0.25)                       # nn.PReLU() default slope

    # --- per-person graphs branch (edge_index_list.shape[1] == P) ---
    out = jax.block_until_ready(
        stgcnn_forward(x, edge_index_list, weight, bias, alpha))
    ref = stgcnn_reference(x, edge_index_list, weight, bias, alpha)
    np.testing.assert_allclose(np.asarray(out), np.asarray(ref),
                               rtol=1e-2, atol=1e-3)

    # --- shared-graph branch (edge_index_list.shape[1] == 1, P-node graphs) ---
    edge_single = jax.random.randint(ke1, (B, 1, E, 2), 0, P, dtype=jnp.int32)
    out1 = jax.block_until_ready(
        stgcnn_forward(x, edge_single, weight, bias, alpha))
    ref1 = stgcnn_reference(x, edge_single, weight, bias, alpha)
    np.testing.assert_allclose(np.asarray(out1), np.asarray(ref1),
                               rtol=1e-2, atol=1e-3)

    print("KERNEL_OK")
</pallas_src>

<mosaic_0001>
module attributes {stable_mosaic.version = 11 : i64} {
  func.func @_stgcnn_kernel(%arg0: i32, %arg1: memref<1x1xf32, #tpu.memory_space<smem>>, %arg2: memref<48x32xf32, #tpu.memory_space<vmem>>, %arg3: memref<1x1x128xi32, #tpu.memory_space<vmem>>, %arg4: memref<1x128x1xi32, #tpu.memory_space<vmem>>, %arg5: memref<1x32xf32, #tpu.memory_space<vmem>>, %arg6: memref<48x32xf32, #tpu.memory_space<vmem>>) attributes {dimension_semantics = [#tpu.dimension_semantics<parallel>], iteration_bounds = array<i64: 2>, scalar_prefetch = 0 : i64, scratch_operands = 0 : i64, tpu.core_type = #tpu.core_type<tc>, window_params = [{transform_indices = @transform_0, window_bounds = array<i64: 1, 1>}, {transform_indices = @transform_1, window_bounds = array<i64: 48, 32>}, {transform_indices = @transform_2, window_bounds = array<i64: 1, 1, 128>}, {transform_indices = @transform_3, window_bounds = array<i64: 1, 128, 1>}, {pipeline_mode = #tpu.pipeline_mode<synchronous>, transform_indices = @transform_4, window_bounds = array<i64: 1, 32>}, {transform_indices = @transform_5, window_bounds = array<i64: 48, 32>}]} {
    %c0 = arith.constant 0 : index
    %c0_0 = arith.constant 0 : index
    %c0_1 = arith.constant 0 : index
    %0 = vector.load %arg3[%c0, %c0_0, %c0_1] : memref<1x1x128xi32, #tpu.memory_space<vmem>>, vector<1x1x128xi32>
    %1 = vector.shape_cast %0 : vector<1x1x128xi32> to vector<1x128xi32>
    %c0_2 = arith.constant 0 : index
    %c0_3 = arith.constant 0 : index
    %c0_4 = arith.constant 0 : index
    %2 = vector.load %arg4[%c0_2, %c0_3, %c0_4] : memref<1x128x1xi32, #tpu.memory_space<vmem>>, vector<1x128x1xi32>
    %3 = vector.shape_cast %2 : vector<1x128x1xi32> to vector<128x1xi32>
    %4 = tpu.iota {dimensions = array<i32: 0>} : vector<48x128xi32>
    %5 = vector.broadcast %1 : vector<1x128xi32> to vector<48x128xi32>
    %6 = arith.cmpi eq, %4, %5 : vector<48x128xi32>
    %7 = arith.extui %6 : vector<48x128xi1> to vector<48x128xi32>
    %8 = arith.sitofp %7 : vector<48x128xi32> to vector<48x128xf32>
    %9 = arith.truncf %8 : vector<48x128xf32> to vector<48x128xbf16>
    %10 = tpu.iota {dimensions = array<i32: 1>} : vector<128x48xi32>
    %11 = vector.broadcast %3 : vector<128x1xi32> to vector<128x48xi32>
    %12 = arith.cmpi eq, %10, %11 : vector<128x48xi32>
    %13 = arith.extui %12 : vector<128x48xi1> to vector<128x48xi32>
    %14 = arith.sitofp %13 : vector<128x48xi32> to vector<128x48xf32>
    %15 = arith.truncf %14 : vector<128x48xf32> to vector<128x48xbf16>
    %cst = arith.constant dense<0.000000e+00> : vector<48x48xf32>
    %16 = tpu.matmul %9, %15, %cst {dimension_numbers = #tpu.dot_dimension_numbers<[1], [0], [0], [1], [0, 0, 1, 1], [], []>} : vector<48x128xbf16>, vector<128x48xbf16>, vector<48x48xf32> -> vector<48x48xf32>
    %17 = tpu.iota {dimensions = array<i32: 0>} : vector<48x48xi32>
    %18 = tpu.iota {dimensions = array<i32: 1>} : vector<48x48xi32>
    %19 = arith.cmpi eq, %17, %18 : vector<48x48xi32>
    %cst_5 = arith.constant 1.000000e+00 : f32
    %20 = vector.broadcast %cst_5 : f32 to vector<48x48xf32>
    %21 = arith.select %19, %20, %16 : vector<48x48xi1>, vector<48x48xf32>
    %cst_6 = arith.constant dense<0.000000e+00> : vector<48xf32>
    %22 = vector.multi_reduction <add>, %21, %cst_6 [1] : vector<48x48xf32> to vector<48xf32>
    %23 = vector.shape_cast %22 : vector<48xf32> to vector<48x1xf32>
    %24 = math.rsqrt %23 : vector<48x1xf32>
    %c0_7 = arith.constant 0 : index
    %c0_8 = arith.constant 0 : index
    %25 = vector.load %arg2[%c0_7, %c0_8] : memref<48x32xf32, #tpu.memory_space<vmem>>, vector<48x32xf32>
    %26 = vector.broadcast %24 : vector<48x1xf32> to vector<48x32xf32>
    %27 = arith.mulf %25, %26 : vector<48x32xf32>
    %cst_9 = arith.constant dense<0.000000e+00> : vector<48x32xf32>
    %28 = tpu.matmul %21, %27, %cst_9 {dimension_numbers = #tpu.dot_dimension_numbers<[1], [0], [0], [1], [0, 0, 1, 1], [], []>} : vector<48x48xf32>, vector<48x32xf32>, vector<48x32xf32> -> vector<48x32xf32>
    %29 = vector.broadcast %24 : vector<48x1xf32> to vector<48x32xf32>
    %30 = arith.mulf %28, %29 : vector<48x32xf32>
    %c0_10 = arith.constant 0 : index
    %c0_11 = arith.constant 0 : index
    %31 = vector.load %arg5[%c0_10, %c0_11] : memref<1x32xf32, #tpu.memory_space<vmem>>, vector<1x32xf32>
    %32 = vector.broadcast %31 : vector<1x32xf32> to vector<48x32xf32>
    %33 = arith.addf %30, %32 : vector<48x32xf32>
    %c0_12 = arith.constant 0 : index
    %c0_13 = arith.constant 0 : index
    %34 = memref.load %arg1[%c0_12, %c0_13] : memref<1x1xf32, #tpu.memory_space<smem>>
    %cst_14 = arith.constant 0.000000e+00 : f32
    %35 = vector.broadcast %cst_14 : f32 to vector<48x32xf32>
    %36 = arith.cmpf ogt, %33, %35 : vector<48x32xf32>
    %37 = vector.broadcast %34 : f32 to vector<48x32xf32>
    %38 = arith.mulf %37, %33 : vector<48x32xf32>
    %39 = arith.select %36, %33, %38 : vector<48x32xi1>, vector<48x32xf32>
    %c0_15 = arith.constant 0 : index
    %c0_16 = arith.constant 0 : index
    %40 = vector.load %arg6[%c0_15, %c0_16] : memref<48x32xf32, #tpu.memory_space<vmem>>, vector<48x32xf32>
    tpu.vector_store %arg6[%c0_15, %c0_16], %39 {strides = array<i32>} : memref<48x32xf32, #tpu.memory_space<vmem>>, vector<48x32xf32>,
    return
  }
  func.func @transform_0(%arg0: i32) -> (i32, i32) {
    %c0_i32 = arith.constant 0 : i32
    %c0_i32_0 = arith.constant 0 : i32
    %c0_i32_1 = arith.constant 0 : i32
    return %c0_i32, %c0_i32_0 : i32, i32
  }
  func.func @transform_1(%arg0: i32) -> (i32, i32) {
    %c0_i32 = arith.constant 0 : i32
    %c0_i32_0 = arith.constant 0 : i32
    return %arg0, %c0_i32 : i32, i32
  }
  func.func @transform_2(%arg0: i32) -> (i32, i32, i32) {
    %c0_i32 = arith.constant 0 : i32
    %c0_i32_0 = arith.constant 0 : i32
    %c0_i32_1 = arith.constant 0 : i32
    return %arg0, %c0_i32, %c0_i32_0 : i32, i32, i32
  }
  func.func @transform_3(%arg0: i32) -> (i32, i32, i32) {
    %c0_i32 = arith.constant 0 : i32
    %c0_i32_0 = arith.constant 0 : i32
    %c0_i32_1 = arith.constant 0 : i32
    return %arg0, %c0_i32, %c0_i32_0 : i32, i32, i32
  }
  func.func @transform_4(%arg0: i32) -> (i32, i32) {
    %c0_i32 = arith.constant 0 : i32
    %c0_i32_0 = arith.constant 0 : i32
    %c0_i32_1 = arith.constant 0 : i32
    return %c0_i32, %c0_i32_0 : i32, i32
  }
  func.func @transform_5(%arg0: i32) -> (i32, i32) {
    %c0_i32 = arith.constant 0 : i32
    %c0_i32_0 = arith.constant 0 : i32
    return %arg0, %c0_i32 : i32, i32
  }
}

</mosaic_0001>

<llo_original>
// kernel: tpu_custom_call.1
$region0: #{tpu_custom_call.1}
  #allocation0 [shape = 'u32[]', space=smem, size = 0x4, offset = 0x4, fixed_abs, tag = 'smem constant byte address 0x4 - core index']
  #allocation1 [shape = 'u32[72,128]{1,0:T(1,128)}', space=vmem, size = 0x9000, scoped, tag = 'internal scratch']
  #allocation2 [shape = 'f32[1,1]{1,0:T(1,128)S(6)}', space=smem, size = 0x200, scoped, tag = 'scoped memory for tpu_custom_call.1']
  %s0 = inlined_call_operand.<no memory space> [shape: f32[1,1], index: 0, kind: input, shape index: {}]
  %s1 = inlined_call_operand.vmem [shape: f32[96,32], index: 1, kind: input, shape index: {}]
  %s2 = inlined_call_operand.vmem [shape: s32[2,1,128], index: 2, kind: input, shape index: {}]
  %s3 = inlined_call_operand.vmem [shape: s32[2,128,1], index: 3, kind: input, shape index: {}]
  %s4 = inlined_call_operand.vmem [shape: f32[1,32], index: 4, kind: input, shape index: {}]
  %s5 = inlined_call_operand.vmem [shape: f32[96,32], index: 5, kind: output, shape index: {}]
  %s6 = sld [smem:[#allocation0]]
  $region53: #{tpu_custom_call.1} parent=0
    _
  %s8 = ssub.s32 1, %s6
  %s9 = scalar_select 0, %s8, %s6
  %10 = sst [smem:[#allocation2]] %s0
  loop: start=0, step=1, limit=4
  $region2: #{tpu_custom_call.1} parent=0 // loop_pre_header
    _
  $region3: #{tpu_custom_call.1} parent=0 // loop_header
    %s12 = sphi 0, %s16
    %p13 = scmp.ge.s32.totalorder %s12, 4
    %s20 = sphi 0, %s20
    %s22 = sphi 0, %s20
    %s23 = sphi 0, %s22
    %s37 = sphi 0, %s23
    %s43 = sphi 0, %s45
    %s46 = sphi 0, %s43
    %s47 = sphi 0, %s46
    %s63 = sphi 0, %s47
    %s69 = sphi 0, %s71
    %s72 = sphi 0, %s69
    %s73 = sphi 0, %s72
    %s89 = sphi 0, %s73
    %s95 = sphi 0, %s97
    %s98 = sphi 0, %s95
    %s99 = sphi 0, %s98
    %s115 = sphi 0, %s99
    %s119 = sphi 0, %s119
    %s121 = sphi 0, %s119
    %s122 = sphi 0, %s121
    %s136 = sphi 0, %s122
    %s142 = sphi 0, %s144
    %s145 = sphi 0, %s142
    %s146 = sphi 0, %s145
    %s162 = sphi 0, %s146
  $region4: #{tpu_custom_call.1} parent=0 // loop_header_branch
    %15 = sbr.rel (%p13) target = $region8
  $region5: #{tpu_custom_call.1} parent=0 // loop_body
    %s17 = ssub.s32 %s12, 1
    %s18 = ssub.s32 %s12, 2
    %s19 = sadd.s32 %s12, 1
    %s21 = sadd.s32 %s20, 1
    %p24 = scmp.eq.s32.totalorder %s12, 1
    %p25 = scmp.ne.s32.totalorder %s20, %s22
    %p26 = scmp.eq.s32.totalorder %s12, 0
    %p27 = por %p25, %p26
    %p28 = scmp.ne.s32.totalorder %s20, %s22
    %p29 = scmp.eq.s32.totalorder %s17, 1
    %p30 = por %p28, %p29
    %p31 = scmp.ne.s32.totalorder %s22, %s23
    %p32 = scmp.eq.s32.totalorder %s17, 0
    %p33 = por %p31, %p32
    %p34 = scmp.ne.s32.totalorder %s22, %s23
    %p35 = scmp.eq.s32.totalorder %s18, 1
    %p36 = por %p34, %p35
    %p38 = scmp.ne.s32.totalorder %s23, %s37
    %p39 = scmp.eq.s32.totalorder %s18, 0
    %p40 = por %p38, %p39
    %s41 = ssub.s32 %s12, %s19
    %p42 = scmp.eq.s32.totalorder %s41, 0
    %s44 = sadd.s32 %s43, 1
    %s45 = scalar_select %p42, %s43, %s44
    %p48 = pneg %p42
    %p49 = scmp.eq.s32.totalorder %s12, 1
    %p50 = por %p48, %p49
    %p51 = scmp.ne.s32.totalorder %s43, %s46
    %p52 = scmp.eq.s32.totalorder %s12, 0
    %p53 = por %p51, %p52
    %p54 = scmp.ne.s32.totalorder %s43, %s46
    %p55 = scmp.eq.s32.totalorder %s17, 1
    %p56 = por %p54, %p55
    %p57 = scmp.ne.s32.totalorder %s46, %s47
    %p58 = scmp.eq.s32.totalorder %s17, 0
    %p59 = por %p57, %p58
    %p60 = scmp.ne.s32.totalorder %s46, %s47
    %p61 = scmp.eq.s32.totalorder %s18, 1
    %p62 = por %p60, %p61
    %p64 = scmp.ne.s32.totalorder %s47, %s63
    %p65 = scmp.eq.s32.totalorder %s18, 0
    %p66 = por %p64, %p65
    %s67 = ssub.s32 %s12, %s19
    %p68 = scmp.eq.s32.totalorder %s67, 0
    %s70 = sadd.s32 %s69, 1
    %s71 = scalar_select %p68, %s69, %s70
    %p74 = pneg %p68
    %p75 = scmp.eq.s32.totalorder %s12, 1
    %p76 = por %p74, %p75
    %p77 = scmp.ne.s32.totalorder %s69, %s72
    %p78 = scmp.eq.s32.totalorder %s12, 0
    %p79 = por %p77, %p78
    %p80 = scmp.ne.s32.totalorder %s69, %s72
    %p81 = scmp.eq.s32.totalorder %s17, 1
    %p82 = por %p80, %p81
    %p83 = scmp.ne.s32.totalorder %s72, %s73
    %p84 = scmp.eq.s32.totalorder %s17, 0
    %p85 = por %p83, %p84
    %p86 = scmp.ne.s32.totalorder %s72, %s73
    %p87 = scmp.eq.s32.totalorder %s18, 1
    %p88 = por %p86, %p87
    %p90 = scmp.ne.s32.totalorder %s73, %s89
    %p91 = scmp.eq.s32.totalorder %s18, 0
    %p92 = por %p90, %p91
    %s93 = ssub.s32 %s12, %s19
    %p94 = scmp.eq.s32.totalorder %s93, 0
    %s96 = sadd.s32 %s95, 1
    %s97 = scalar_select %p94, %s95, %s96
    %p100 = pneg %p94
    %p101 = scmp.eq.s32.totalorder %s12, 1
    %p102 = por %p100, %p101
    %p103 = scmp.ne.s32.totalorder %s95, %s98
    %p104 = scmp.eq.s32.totalorder %s12, 0
    %p105 = por %p103, %p104
    %p106 = scmp.ne.s32.totalorder %s95, %s98
    %p107 = scmp.eq.s32.totalorder %s17, 1
    %p108 = por %p106, %p107
    %p109 = scmp.ne.s32.totalorder %s98, %s99
    %p110 = scmp.eq.s32.totalorder %s17, 0
    %p111 = por %p109, %p110
    %p112 = scmp.ne.s32.totalorder %s98, %s99
    %p113 = scmp.eq.s32.totalorder %s18, 1
    %p114 = por %p112, %p113
    %p116 = scmp.ne.s32.totalorder %s99, %s115
    %p117 = scmp.eq.s32.totalorder %s18, 0
    %p118 = por %p116, %p117
    %s120 = sadd.s32 %s119, 1
    %p123 = scmp.eq.s32.totalorder %s12, 1
    %p124 = scmp.ne.s32.totalorder %s119, %s121
    %p125 = scmp.eq.s32.totalorder %s12, 0
    %p126 = por %p124, %p125
    %p127 = scmp.ne.s32.totalorder %s119, %s121
    %p128 = scmp.eq.s32.totalorder %s17, 1
    %p129 = por %p127, %p128
    %p130 = scmp.ne.s32.totalorder %s121, %s122
    %p131 = scmp.eq.s32.totalorder %s17, 0
    %p132 = por %p130, %p131
    %p133 = scmp.ne.s32.totalorder %s121, %s122
    %p134 = scmp.eq.s32.totalorder %s18, 1
    %p135 = por %p133, %p134
    %p137 = scmp.ne.s32.totalorder %s122, %s136
    %p138 = scmp.eq.s32.totalorder %s18, 0
    %p139 = por %p137, %p138
    %s140 = ssub.s32 %s12, %s19
    %p141 = scmp.eq.s32.totalorder %s140, 0
    %s143 = sadd.s32 %s142, 1
    %s144 = scalar_select %p141, %s142, %s143
    %p147 = pneg %p141
    %p148 = scmp.eq.s32.totalorder %s12, 1
    %p149 = por %p147, %p148
    %p150 = scmp.ne.s32.totalorder %s142, %s145
    %p151 = scmp.eq.s32.totalorder %s12, 0
    %p152 = por %p150, %p151
    %p153 = scmp.ne.s32.totalorder %s142, %s145
    %p154 = scmp.eq.s32.totalorder %s17, 1
    %p155 = por %p153, %p154
    %p156 = scmp.ne.s32.totalorder %s145, %s146
    %p157 = scmp.eq.s32.totalorder %s17, 0
    %p158 = por %p156, %p157
    %p159 = scmp.ne.s32.totalorder %s145, %s146
    %p160 = scmp.eq.s32.totalorder %s18, 1
    %p161 = por %p159, %p160
    %p163 = scmp.ne.s32.totalorder %s146, %s162
    %p164 = scmp.eq.s32.totalorder %s18, 0
    %p165 = por %p163, %p164
    %p166 = scmp.le.s32.totalorder 1, %s12
    %p167 = scmp.lt.s32.totalorder %s12, 3
    %p168 = pnand %p166, %p167
    %p169 = pneg %p168
    // Predicated region
    $region9: #{tpu_custom_call.1} parent=5 // pred_check
      _
    $region10: #{tpu_custom_call.1} parent=5 // pred_check_branch
      %171 = sbr.rel (%p168) target = $region12
    $region11: #{tpu_custom_call.1} parent=5 // pred_region
      %s172 = ssub.s32 %s12, 1
      // Predicated region
      $region13: #{tpu_custom_call.1} parent=11 // pred_check
        %p173 = pneg %p33
      $region14: #{tpu_custom_call.1} parent=11 // pred_check_branch
        %175 = sbr.rel (%p173) target = $region16
      $region15: #{tpu_custom_call.1} parent=11 // pred_region
        _
      $region16: #{tpu_custom_call.1} parent=11 // pred_fallthru
        _
      // Predicated region
      $region17: #{tpu_custom_call.1} parent=11 // pred_check
        %p176 = pneg %p132
      $region18: #{tpu_custom_call.1} parent=11 // pred_check_branch
        %178 = sbr.rel (%p176) target = $region20
      $region19: #{tpu_custom_call.1} parent=11 // pred_region
        _
      $region20: #{tpu_custom_call.1} parent=11 // pred_fallthru
        _
    $region12: #{tpu_custom_call.1} parent=5 // pred_fallthru
      _
    %p179 = scmp.lt.s32.totalorder %s12, 2
    // Predicated region
    $region21: #{tpu_custom_call.1} parent=5 // pred_check
      %p180 = pneg %p179
    $region22: #{tpu_custom_call.1} parent=5 // pred_check_branch
      %182 = sbr.rel (%p180) target = $region24
    $region23: #{tpu_custom_call.1} parent=5 // pred_region
      // Predicated region
      $region25: #{tpu_custom_call.1} parent=23 // pred_check
        %p183 = pneg %p53
      $region26: #{tpu_custom_call.1} parent=23 // pred_check_branch
        %185 = sbr.rel (%p183) target = $region28
      $region27: #{tpu_custom_call.1} parent=23 // pred_region
        %s186 = smul.u32 6, %s12
        %p187 = scmp.lt.s32.totalorder %s186, 11
        %s188 = scalar_select %p187, %s186, 11
        %s189 = smul.addr %s188, 8
        %s190 = scalar_lea.vmem %s1, %s189
        %s191 = smul.u32 6, %s12
      $region28: #{tpu_custom_call.1} parent=23 // pred_fallthru
        _
      // Predicated region
      $region29: #{tpu_custom_call.1} parent=23 // pred_check
        %p192 = pneg %p79
      $region30: #{tpu_custom_call.1} parent=23 // pred_check_branch
        %194 = sbr.rel (%p192) target = $region32
      $region31: #{tpu_custom_call.1} parent=23 // pred_region
        %p195 = scmp.lt.s32.totalorder %s12, 1
        %s196 = scalar_select %p195, %s12, 1
        %s197 = scalar_lea.vmem %s2, %s196
      $region32: #{tpu_custom_call.1} parent=23 // pred_fallthru
        _
      // Predicated region
      $region33: #{tpu_custom_call.1} parent=23 // pred_check
        %p198 = pneg %p105
      $region34: #{tpu_custom_call.1} parent=23 // pred_check_branch
        %200 = sbr.rel (%p198) target = $region36
      $region35: #{tpu_custom_call.1} parent=23 // pred_region
        %p201 = scmp.lt.s32.totalorder %s12, 1
        %s202 = scalar_select %p201, %s12, 1
        %s203 = smul.addr %s202, 16
        %s204 = smul.addr %s203, 8
        %s205 = scalar_lea.vmem %s3, %s204
      $region36: #{tpu_custom_call.1} parent=23 // pred_fallthru
        _
    $region24: #{tpu_custom_call.1} parent=5 // pred_fallthru
      _
    %p206 = scmp.le.s32.totalorder 1, %s12
    %p207 = scmp.lt.s32.totalorder %s12, 3
    %p208 = pnand %p206, %p207
    %p209 = pneg %p208
    // Predicated region
    $region37: #{tpu_custom_call.1} parent=5 // pred_check
      _
    $region38: #{tpu_custom_call.1} parent=5 // pred_check_branch
      %211 = sbr.rel (%p208) target = $region40
    $region39: #{tpu_custom_call.1} parent=5 // pred_region
      %s212 = ssub.s32 %s12, 1
      %p213 = pneg %p33
      %p214 = pneg %p30
      %s215 = smul.u32 6, %s17
      %p216 = scmp.lt.s32.totalorder %s215, 11
      %s217 = scalar_select %p216, %s215, 11
      %s218 = smul.addr %s217, 8
      %s219 = scalar_lea.vmem %s1, %s218
      %p220 = pneg %p59
      %p221 = pneg %p56
      %p222 = scmp.lt.s32.totalorder %s17, 1
      %s223 = scalar_select %p222, %s17, 1
      %s224 = scalar_lea.vmem %s2, %s223
      %p225 = pneg %p85
      %p226 = pneg %p82
      %p227 = scmp.lt.s32.totalorder %s17, 1
      %s228 = scalar_select %p227, %s17, 1
      %s229 = smul.addr %s228, 16
      %s230 = smul.addr %s229, 8
      %s231 = scalar_lea.vmem %s3, %s230
      %p232 = pneg %p111
      %p233 = pneg %p108
      %p234 = pneg %p132
      %p235 = pneg %p129
      %p236 = pneg %p158
      %p237 = pneg %p155
      %s238 = smul.u32 6, %s17
      %p239 = scmp.lt.s32.totalorder %s238, 11
      %s240 = scalar_select %p239, %s238, 11
      %s241 = smul.addr %s240, 8
      %s242 = scalar_lea.vmem %s5, %s241
      %s243 = smul.u32 6, %s17
      %p244 = scmp.lt.s32.totalorder %s243, 11
      %s245 = scalar_select %p244, %s243, 11
      %s246 = smul.addr %s245, 8
      %s247 = scalar_lea.vmem %s1, %s246
      %s248 = smul.u32 6, %s17
      %p249 = scmp.lt.s32.totalorder %s17, 1
      %s250 = scalar_select %p249, %s17, 1
      %s251 = scalar_lea.vmem %s2, %s250
      %p252 = scmp.lt.s32.totalorder %s17, 1
      %s253 = scalar_select %p252, %s17, 1
      %s254 = smul.addr %s253, 16
      %s255 = smul.addr %s254, 8
      %s256 = scalar_lea.vmem %s3, %s255
      %s257 = smul.u32 6, %s17
      %p258 = scmp.lt.s32.totalorder %s257, 11
      %s259 = scalar_select %p258, %s257, 11
      %s260 = smul.addr %s259, 8
      %s261 = scalar_lea.vmem %s5, %s260
      %s262 = smul.u32 6, %s17
      %v263 = vld [vmem:[%s251] sm:$0x1]
      %v264 = vld [vmem:[%s256] sm:$0xff]
      %v265 = vld [vmem:[%s256 + $0x8] sm:$0xff]
      %v266 = vld [vmem:[%s256 + $0x10] sm:$0xff]
      %v267 = vld [vmem:[%s256 + $0x18] sm:$0xff]
      %v268 = vld [vmem:[%s256 + $0x20] sm:$0xff]
      %v269 = vld [vmem:[%s256 + $0x28] sm:$0xff]
      %v270 = vld [vmem:[%s256 + $0x30] sm:$0xff]
      %v271 = vld [vmem:[%s256 + $0x38] sm:$0xff]
      %v272 = vld [vmem:[%s256 + $0x40] sm:$0xff]
      %v273 = vld [vmem:[%s256 + $0x48] sm:$0xff]
      %v274 = vld [vmem:[%s256 + $0x50] sm:$0xff]
      %v275 = vld [vmem:[%s256 + $0x58] sm:$0xff]
      %v276 = vld [vmem:[%s256 + $0x60] sm:$0xff]
      %v277 = vld [vmem:[%s256 + $0x68] sm:$0xff]
      %v278 = vld [vmem:[%s256 + $0x70] sm:$0xff]
      %v279 = vld [vmem:[%s256 + $0x78] sm:$0xff]
      %v280 = vlaneseq
      %v281 = vshrl.u32 %v280, 7
      %v282 = vadd.s32 %v281, 8
      %v283 = vadd.s32 %v281, 16
      %v284 = vadd.s32 %v281, 24
      %v285 = vadd.s32 %v281, 32
      %v286 = vadd.s32 %v281, 40
      %v287 = vperm.slane %v263, 0
      %vm288 = vcmp.eq.s32.totalorder %v281, %v287
      %vm289 = vcmp.eq.s32.totalorder %v282, %v287
      %vm290 = vcmp.eq.s32.totalorder %v283, %v287
      %vm291 = vcmp.eq.s32.totalorder %v284, %v287
      %vm292 = vcmp.eq.s32.totalorder %v285, %v287
      %vm293 = vcmp.eq.s32.totalorder %v286, %v287
      %v294 = vsel %vm288, 1, 0
      %v295 = vsel %vm289, 1, 0
      %v296 = vsel %vm290, 1, 0
      %v297 = vsel %vm291, 1, 0
      %v298 = vsel %vm292, 1, 0
      %v299 = vsel %vm293, 1, 0
      %v300 = vcvt.s32.f32 %v294
      %v301 = vcvt.s32.f32 %v295
      %v302 = vcvt.s32.f32 %v296
      %v303 = vcvt.s32.f32 %v297
      %v304 = vcvt.s32.f32 %v298
      %v305 = vcvt.s32.f32 %v299
      %v306 = vpack.c.bf16 %v301, %v300
      %v307 = vpack.c.bf16 %v303, %v302
      %v308 = vpack.c.bf16 %v305, %v304
      %v309 = vlaneseq
      %v310 = vand.u32 %v309, 127
      %311 = vset.pattern.permute.xlu0 0
      %312 = vperm.xlu0 %311, %v264
      %v313 = vpop.permute.xlu0 %312
      %314 = vset.pattern.permute.xlu0 0
      %315 = vperm.xlu0 %314, %v265
      %v316 = vpop.permute.xlu0 %315
      %317 = vset.pattern.permute.xlu0 0
      %318 = vperm.xlu0 %317, %v266
      %v319 = vpop.permute.xlu0 %318
      %320 = vset.pattern.permute.xlu0 0
      %321 = vperm.xlu0 %320, %v267
      %v322 = vpop.permute.xlu0 %321
      %323 = vset.pattern.permute.xlu0 0
      %324 = vperm.xlu0 %323, %v268
      %v325 = vpop.permute.xlu0 %324
      %326 = vset.pattern.permute.xlu0 0
      %327 = vperm.xlu0 %326, %v269
      %v328 = vpop.permute.xlu0 %327
      %329 = vset.pattern.permute.xlu0 0
      %330 = vperm.xlu0 %329, %v270
      %v331 = vpop.permute.xlu0 %330
      %332 = vset.pattern.permute.xlu0 0
      %333 = vperm.xlu0 %332, %v271
      %v334 = vpop.permute.xlu0 %333
      %335 = vset.pattern.permute.xlu0 0
      %336 = vperm.xlu0 %335, %v272
      %v337 = vpop.permute.xlu0 %336
      %338 = vset.pattern.permute.xlu0 0
      %339 = vperm.xlu0 %338, %v273
      %v340 = vpop.permute.xlu0 %339
      %341 = vset.pattern.permute.xlu0 0
      %342 = vperm.xlu0 %341, %v274
      %v343 = vpop.permute.xlu0 %342
      %344 = vset.pattern.permute.xlu0 0
      %345 = vperm.xlu0 %344, %v275
      %v346 = vpop.permute.xlu0 %345
      %347 = vset.pattern.permute.xlu0 0
      %348 = vperm.xlu0 %347, %v276
      %v349 = vpop.permute.xlu0 %348
      %350 = vset.pattern.permute.xlu0 0
      %351 = vperm.xlu0 %350, %v277
      %v352 = vpop.permute.xlu0 %351
      %353 = vset.pattern.permute.xlu0 0
      %354 = vperm.xlu0 %353, %v278
      %v355 = vpop.permute.xlu0 %354
      %356 = vset.pattern.permute.xlu0 0
      %357 = vperm.xlu0 %356, %v279
      %v358 = vpop.permute.xlu0 %357
      %vm359 = vcmp.eq.s32.totalorder %v310, %v313
      %vm360 = vcmp.eq.s32.totalorder %v310, %v316
      %vm361 = vcmp.eq.s32.totalorder %v310, %v319
      %vm362 = vcmp.eq.s32.totalorder %v310, %v322
      %vm363 = vcmp.eq.s32.totalorder %v310, %v325
      %vm364 = vcmp.eq.s32.totalorder %v310, %v328
      %vm365 = vcmp.eq.s32.totalorder %v310, %v331
      %vm366 = vcmp.eq.s32.totalorder %v310, %v334
      %vm367 = vcmp.eq.s32.totalorder %v310, %v337
      %vm368 = vcmp.eq.s32.totalorder %v310, %v340
      %vm369 = vcmp.eq.s32.totalorder %v310, %v343
      %vm370 = vcmp.eq.s32.totalorder %v310, %v346
      %vm371 = vcmp.eq.s32.totalorder %v310, %v349
      %vm372 = vcmp.eq.s32.totalorder %v310, %v352
      %vm373 = vcmp.eq.s32.totalorder %v310, %v355
      %vm374 = vcmp.eq.s32.totalorder %v310, %v358
      %v375 = vsel %vm359, 1, 0
      %v376 = vsel %vm360, 1, 0
      %v377 = vsel %vm361, 1, 0
      %v378 = vsel %vm362, 1, 0
      %v379 = vsel %vm363, 1, 0
      %v380 = vsel %vm364, 1, 0
      %v381 = vsel %vm365, 1, 0
      %v382 = vsel %vm366, 1, 0
      %v383 = vsel %vm367, 1, 0
      %v384 = vsel %vm368, 1, 0
      %v385 = vsel %vm369, 1, 0
      %v386 = vsel %vm370, 1, 0
      %v387 = vsel %vm371, 1, 0
      %v388 = vsel %vm372, 1, 0
      %v389 = vsel %vm373, 1, 0
      %v390 = vsel %vm374, 1, 0
      %v391 = vcvt.s32.f32 %v375
      %v392 = vcvt.s32.f32 %v376
      %v393 = vcvt.s32.f32 %v377
      %v394 = vcvt.s32.f32 %v378
      %v395 = vcvt.s32.f32 %v379
      %v396 = vcvt.s32.f32 %v380
      %v397 = vcvt.s32.f32 %v381
      %v398 = vcvt.s32.f32 %v382
      %v399 = vcvt.s32.f32 %v383
      %v400 = vcvt.s32.f32 %v384
      %v401 = vcvt.s32.f32 %v385
      %v402 = vcvt.s32.f32 %v386
      %v403 = vcvt.s32.f32 %v387
      %v404 = vcvt.s32.f32 %v388
      %v405 = vcvt.s32.f32 %v389
      %v406 = vcvt.s32.f32 %v390
      %v407 = vpack.c.bf16 %v392, %v391
      %v408 = vpack.c.bf16 %v394, %v393
      %v409 = vpack.c.bf16 %v396, %v395
      %v410 = vpack.c.bf16 %v398, %v397
      %v411 = vpack.c.bf16 %v400, %v399
      %v412 = vpack.c.bf16 %v402, %v401
      %v413 = vpack.c.bf16 %v404, %v403
      %v414 = vpack.c.bf16 %v406, %v405
      %415 = vmatpush.bf16.msra.mxu0 %v414
      %416 = vmatpush.bf16.msra.mxu0 %v413
      %417 = vmatpush.bf16.msra.mxu0 %v412
      %418 = vmatpush.bf16.msra.mxu0 %v411
      %419 = vmatpush.bf16.msra.mxu0 %v410
      %420 = vmatpush.bf16.msra.mxu0 %v409
      %421 = vmatpush.bf16.msra.mxu0 %v408
      %422 = vmatpush.bf16.msra.mxu0 %v407
      %423 = vmatmul.bf16.gmra.mxu0 %v306
      %v424 = vpop.f32.mrf.mxu0
      %v425 = vadd.f32 0.0, %v424
      %v426 = vpop.f32.mrf.mxu0
      %v427 = vadd.f32 0.0, %v426
      %428 = vmatmul.bf16.gmra.mxu0 %v307
      %v429 = vpop.f32.mrf.mxu0
      %v430 = vadd.f32 0.0, %v429
      %v431 = vpop.f32.mrf.mxu0
      %v432 = vadd.f32 0.0, %v431
      %433 = vmatmul.bf16.gmra.mxu0 %v308
      %v434 = vpop.f32.mrf.mxu0
      %v435 = vadd.f32 0.0, %v434
      %v436 = vpop.f32.mrf.mxu0
      %v437 = vadd.f32 0.0, %v436
      %438 = vdwg.mxu0
      %vm439 = vcmp.eq.s32.totalorder %v281, %v310
      %vm440 = vcmp.eq.s32.totalorder %v282, %v310
      %vm441 = vcmp.eq.s32.totalorder %v283, %v310
      %vm442 = vcmp.eq.s32.totalorder %v284, %v310
      %vm443 = vcmp.eq.s32.totalorder %v285, %v310
      %vm444 = vcmp.eq.s32.totalorder %v286, %v310
      %v445 = vsel %vm439, 1.0, %v425
      %v446 = vsel %vm440, 1.0, %v427
      %v447 = vsel %vm441, 1.0, %v430
      %v448 = vsel %vm442, 1.0, %v432
      %v449 = vsel %vm443, 1.0, %v435
      %v450 = vsel %vm444, 1.0, %v437
      %vm451 = vcmask 392192
      %v452 = vsel %vm451, %v445, 0.0
      %453 = vadd.xlane.f32.xlu0 %v452
      %v454 = vpop.xlane.xlu0 %453
      %v455 = vsel %vm451, %v446, 0.0
      %456 = vadd.xlane.f32.xlu0 %v455
      %v457 = vpop.xlane.xlu0 %456
      %v458 = vsel %vm451, %v447, 0.0
      %459 = vadd.xlane.f32.xlu0 %v458
      %v460 = vpop.xlane.xlu0 %459
      %v461 = vsel %vm451, %v448, 0.0
      %462 = vadd.xlane.f32.xlu0 %v461
      %v463 = vpop.xlane.xlu0 %462
      %v464 = vsel %vm451, %v449, 0.0
      %465 = vadd.xlane.f32.xlu0 %v464
      %v466 = vpop.xlane.xlu0 %465
      %v467 = vsel %vm451, %v450, 0.0
      %468 = vadd.xlane.f32.xlu0 %v467
      %v469 = vpop.xlane.xlu0 %468
      %v470 = vrsqrt.pop %v454
      %v471 = vmul.f32 %v470, %v454
      %v472 = vmul.f32 %v471, %v470
      %v473 = vmul.f32 0.5, %v472
      %v474 = vsub.f32 1.5, %v473
      %v475 = vmul.f32 %v470, %v474
      %vm476 = vweird.f32 %v454
      %vm477 = vweird.f32 %v470
      %vm478 = vmor %vm476, %vm477
      %v479 = vsel %vm478, %v470, %v475
      %v480 = vrsqrt.pop %v457
      %v481 = vmul.f32 %v480, %v457
      %v482 = vmul.f32 %v481, %v480
      %v483 = vmul.f32 0.5, %v482
      %v484 = vsub.f32 1.5, %v483
      %v485 = vmul.f32 %v480, %v484
      %vm486 = vweird.f32 %v457
      %vm487 = vweird.f32 %v480
      %vm488 = vmor %vm486, %vm487
      %v489 = vsel %vm488, %v480, %v485
      %v490 = vrsqrt.pop %v460
      %v491 = vmul.f32 %v490, %v460
      %v492 = vmul.f32 %v491, %v490
      %v493 = vmul.f32 0.5, %v492
      %v494 = vsub.f32 1.5, %v493
      %v495 = vmul.f32 %v490, %v494
      %vm496 = vweird.f32 %v460
      %vm497 = vweird.f32 %v490
      %vm498 = vmor %vm496, %vm497
      %v499 = vsel %vm498, %v490, %v495
      %v500 = vrsqrt.pop %v463
      %v501 = vmul.f32 %v500, %v463
      %v502 = vmul.f32 %v501, %v500
      %v503 = vmul.f32 0.5, %v502
      %v504 = vsub.f32 1.5, %v503
      %v505 = vmul.f32 %v500, %v504
      %vm506 = vweird.f32 %v463
      %vm507 = vweird.f32 %v500
      %vm508 = vmor %vm506, %vm507
      %v509 = vsel %vm508, %v500, %v505
      %v510 = vrsqrt.pop %v466
      %v511 = vmul.f32 %v510, %v466
      %v512 = vmul.f32 %v511, %v510
      %v513 = vmul.f32 0.5, %v512
      %v514 = vsub.f32 1.5, %v513
      %v515 = vmul.f32 %v510, %v514
      %vm516 = vweird.f32 %v466
      %vm517 = vweird.f32 %v510
      %vm518 = vmor %vm516, %vm517
      %v519 = vsel %vm518, %v510, %v515
      %v520 = vrsqrt.pop %v469
      %v521 = vmul.f32 %v520, %v469
      %v522 = vmul.f32 %v521, %v520
      %v523 = vmul.f32 0.5, %v522
      %v524 = vsub.f32 1.5, %v523
      %v525 = vmul.f32 %v520, %v524
      %vm526 = vweird.f32 %v469
      %vm527 = vweird.f32 %v520
      %vm528 = vmor %vm526, %vm527
      %v529 = vsel %vm528, %v520, %v525
      %v530 = vld [vmem:[%s247] sm:$0xff]
      %v531 = vld [vmem:[%s247 + $0x8] sm:$0xff]
      %v532 = vld [vmem:[%s247 + $0x10] sm:$0xff]
      %v533 = vld [vmem:[%s247 + $0x18] sm:$0xff]
      %v534 = vld [vmem:[%s247 + $0x20] sm:$0xff]
      %v535 = vld [vmem:[%s247 + $0x28] sm:$0xff]
      %v536 = vmul.f32 %v530, %v479
      %v537 = vmul.f32 %v531, %v489
      %v538 = vmul.f32 %v532, %v499
      %v539 = vmul.f32 %v533, %v509
      %v540 = vmul.f32 %v534, %v519
      %v541 = vmul.f32 %v535, %v529
      %v543 = vsel %vm451, %v445, 0
      %v546 = vsel %vm451, %v446, 0
      %v549 = vsel %vm451, %v447, 0
      %v552 = vsel %vm451, %v448, 0
      %v555 = vsel %vm451, %v449, 0
      %v558 = vsel %vm451, %v450, 0
      %560 = vmatpush.msra.mxu0 0.0
      %561 = vmatpush.msra.mxu0 0.0
      %562 = vmatpush.msra.mxu0 0.0
      %563 = vmatpush.msra.mxu0 0.0
      %564 = vmatpush.msra.mxu0 0.0
      %565 = vmatpush.msra.mxu0 0.0
      %566 = vmatpush.msra.mxu0 0.0
      %567 = vmatpush.msra.mxu0 0.0
      %568 = vmatpush.msra.mxu0 0.0
      %569 = vmatpush.msra.mxu0 0.0
      %570 = vmatpush.msra.mxu0 %v541
      %571 = vmatpush.msra.mxu0 %v540
      %572 = vmatpush.msra.mxu0 %v539
      %573 = vmatpush.msra.mxu0 %v538
      %574 = vmatpush.msra.mxu0 %v537
      %575 = vmatpush.msra.mxu0 %v536
      %576 = vmatmul.f32.gmra.mxu0 %v543
      %v577 = vpop.f32.mrf.mxu0
      %v578 = vadd.f32 0.0, %v577
      %579 = vmatmul.f32.gmra.mxu0 %v546
      %v580 = vpop.f32.mrf.mxu0
      %v581 = vadd.f32 0.0, %v580
      %582 = vmatmul.f32.gmra.mxu0 %v549
      %v583 = vpop.f32.mrf.mxu0
      %v584 = vadd.f32 0.0, %v583
      %585 = vmatmul.f32.gmra.mxu0 %v552
      %v586 = vpop.f32.mrf.mxu0
      %v587 = vadd.f32 0.0, %v586
      %588 = vmatmul.f32.gmra.mxu0 %v555
      %v589 = vpop.f32.mrf.mxu0
      %v590 = vadd.f32 0.0, %v589
      %591 = vmatmul.f32.gmra.mxu0 %v558
      %v592 = vpop.f32.mrf.mxu0
      %v593 = vadd.f32 0.0, %v592
      %594 = vdwg.mxu0
      %v595 = vmul.f32 %v578, %v479
      %v596 = vmul.f32 %v581, %v489
      %v597 = vmul.f32 %v584, %v499
      %v598 = vmul.f32 %v587, %v509
      %v599 = vmul.f32 %v590, %v519
      %v600 = vmul.f32 %v593, %v529
      %v601 = vld [vmem:[%s4] sm:$0x1]
      %v603 = vperm.slane %v601, 0
      %v605 = vadd.f32 %v595, %v603
      %v606 = vadd.f32 %v596, %v603
      %v607 = vadd.f32 %v597, %v603
      %v608 = vadd.f32 %v598, %v603
      %v609 = vadd.f32 %v599, %v603
      %v610 = vadd.f32 %v600, %v603
      %s611 = sld [smem:[#allocation2]]
      %vm612 = vcmp.gt.f32.partialorder %v605, 0.0
      %vm613 = vcmp.gt.f32.partialorder %v606, 0.0
      %vm614 = vcmp.gt.f32.partialorder %v607, 0.0
      %vm615 = vcmp.gt.f32.partialorder %v608, 0.0
      %vm616 = vcmp.gt.f32.partialorder %v609, 0.0
      %vm617 = vcmp.gt.f32.partialorder %v610, 0.0
      %v618 = vstv %s611
      %v619 = vmul.f32 %v618, %v605
      %v620 = vmul.f32 %v618, %v606
      %v621 = vmul.f32 %v618, %v607
      %v622 = vmul.f32 %v618, %v608
      %v623 = vmul.f32 %v618, %v609
      %v624 = vmul.f32 %v618, %v610
      %v625 = vsel %vm612, %v605, %v619
      %v626 = vsel %vm613, %v606, %v620
      %v627 = vsel %vm614, %v607, %v621
      %v628 = vsel %vm615, %v608, %v622
      %v629 = vsel %vm616, %v609, %v623
      %v630 = vsel %vm617, %v610, %v624
      %vm631 = vcmask 261120
      %632 = vst.msk [vmem:[%s261] sm:$0xff] %vm631, %v625
      %633 = vst.msk [vmem:[%s261 + $0x8] sm:$0xff] %vm631, %v626
      %634 = vst.msk [vmem:[%s261 + $0x10] sm:$0xff] %vm631, %v627
      %635 = vst.msk [vmem:[%s261 + $0x18] sm:$0xff] %vm631, %v628
      %636 = vst.msk [vmem:[%s261 + $0x20] sm:$0xff] %vm631, %v629
      %637 = vst.msk [vmem:[%s261 + $0x28] sm:$0xff] %vm631, %v630
      %s638 = smul.u32 6, %s17
      %p639 = scmp.lt.s32.totalorder %s638, 11
      %s640 = scalar_select %p639, %s638, 11
      %s641 = smul.addr %s640, 8
      %s642 = scalar_lea.vmem %s5, %s641
      // Predicated region
      $region41: #{tpu_custom_call.1} parent=39 // pred_check
        %p643 = pneg %p155
      $region42: #{tpu_custom_call.1} parent=39 // pred_check_branch
        %645 = sbr.rel (%p643) target = $region44
      $region43: #{tpu_custom_call.1} parent=39 // pred_region
        %s646 = smul.u32 6, %s17
      $region44: #{tpu_custom_call.1} parent=39 // pred_fallthru
        _
    $region40: #{tpu_custom_call.1} parent=5 // pred_fallthru
      _
    %p647 = scmp.le.s32.totalorder 2, %s12
    // Predicated region
    $region45: #{tpu_custom_call.1} parent=5 // pred_check
      %p648 = pneg %p647
    $region46: #{tpu_custom_call.1} parent=5 // pred_check_branch
      %650 = sbr.rel (%p648) target = $region48
    $region47: #{tpu_custom_call.1} parent=5 // pred_region
      %s651 = ssub.s32 %s12, 2
      // Predicated region
      $region49: #{tpu_custom_call.1} parent=47 // pred_check
        %p652 = pneg %p161
      $region50: #{tpu_custom_call.1} parent=47 // pred_check_branch
        %654 = sbr.rel (%p652) target = $region52
      $region51: #{tpu_custom_call.1} parent=47 // pred_region
        %s655 = smul.u32 6, %s18
        %p656 = scmp.lt.s32.totalorder %s655, 11
        %s657 = scalar_select %p656, %s655, 11
        %s658 = smul.addr %s657, 8
        %s659 = scalar_lea.vmem %s5, %s658
      $region52: #{tpu_custom_call.1} parent=47 // pred_fallthru
        _
    $region48: #{tpu_custom_call.1} parent=5 // pred_fallthru
      _
  $region6: #{tpu_custom_call.1} parent=0 // loop_footer
    %s16 = sadd.s32 1, %s12
  $region7: #{tpu_custom_call.1} parent=0 // loop_footer_branch
    %11 = sbr.rel target = $region3
  $region8: #{tpu_custom_call.1} parent=0 // loop_exit
    _

</llo_original>
